<compile_context>
chip_gen: v7x
topology: tpu7x:2x2x1
jax: 0.10.0
libtpu: 0.0.40
codegen_flags: <defaults>
</compile_context>

<pallas_src>
import functools

import jax
import jax.numpy as jnp
from jax import lax
from jax.experimental import pallas as pl
from jax.experimental.pallas import tpu as pltpu

_TILE_B_MAX = 4096   # big tiles amortize the ~0.35 us per-grid-step overhead


def _round_up(x, m):
    return ((x + m - 1) // m) * m


def _vmem_budget_bytes():
    """Generation-aware VMEM budget (also passed as vmem_limit_bytes)."""
    try:
        cap = int(pltpu.get_tpu_info().vmem_capacity_bytes)
    except Exception:
        cap = 64 << 20          # conservative: v7x per-TensorCore physical
    # Use at most half of physical VMEM, capped at 32 MiB, floor 8 MiB.
    return max(8 << 20, min(cap // 2, 32 << 20))


def _normal_policy_kernel(x_ref, w1_ref, w2_ref, wh_ref, b_ref, out_ref, *,
                          hidden1, hidden2, action, head_out, out_width,
                          compute_logstd, min_logstd, max_logstd):
    # Bias rows each start at lane 0 of their own sublane (no lane-offset
    # slices): row 0 = b1, row 1 = b2, row 2 = packed head bias.
    b1 = b_ref[0:1, :hidden1]
    b2 = b_ref[1:2, :hidden2]
    bh = b_ref[2:3, :head_out]

    # In-kernel cast (a no-op for the default f32 path); MXU accumulates f32,
    # elementwise (bias/ReLU/tanh/clip) stays f32.
    x = x_ref[...].astype(w1_ref.dtype)
    h = jnp.dot(x, w1_ref[...], preferred_element_type=jnp.float32)
    h = jnp.maximum(h + b1, 0.0)
    h = jnp.dot(h.astype(w2_ref.dtype), w2_ref[...],
                preferred_element_type=jnp.float32)
    h = jnp.maximum(h + b2, 0.0)
    # Fused heads: columns [0:action) = mu, [action:2*action) = raw logstd.
    heads = jnp.dot(h.astype(wh_ref.dtype), wh_ref[...],
                    preferred_element_type=jnp.float32) + bh

    mu = heads[:, :action]
    parts = [mu, jnp.tanh(mu)]
    if compute_logstd:
        parts.append(jnp.clip(heads[:, action:2 * action],
                              min_logstd, max_logstd))
    used = len(parts) * action
    if out_width > used:
        parts.append(jnp.zeros((mu.shape[0], out_width - used), jnp.float32))
    # Single lane-dense store: [mu | tanh(mu) | clipped logstd | 0-pad].
    out_ref[...] = jnp.concatenate(parts, axis=1).astype(out_ref.dtype)


def prepare_params(torch_params, *, use_std_parameter=False,
                   matmul_dtype=jnp.float32):
    """One-time conversion of PyTorch (out, in) Linear params to kernel layout.

    Call once when loading the policy, not per forward call. matmul_dtype
    defaults to float32 for exact parity with the f32 PyTorch module; pass
    jnp.bfloat16 to trade ~1e-3 relative error for faster MXU passes.
    """
    if use_std_parameter:
        w1, b1, w2, b2, wmu, bmu, logstd_param = torch_params
        wh = jnp.asarray(wmu, jnp.float32).T
        bh = jnp.asarray(bmu, jnp.float32)
        logstd_param = jnp.asarray(logstd_param, jnp.float32)
    else:
        w1, b1, w2, b2, wmu, bmu, wls, bls = torch_params
        wh = jnp.concatenate([jnp.asarray(wmu, jnp.float32).T,
                              jnp.asarray(wls, jnp.float32).T], axis=1)
        bh = jnp.concatenate([jnp.asarray(bmu, jnp.float32),
                              jnp.asarray(bls, jnp.float32)], axis=0)
        logstd_param = None

    hidden1 = int(w1.shape[0])
    hidden2 = int(w2.shape[0])
    action = int(wmu.shape[0])
    head_out = int(wh.shape[1])

    # Pack the three bias vectors as rows of a (3, padded-to-128) buffer so
    # every segment starts at lane 0 (free vreg selections in the kernel).
    pad_w = _round_up(max(hidden1, hidden2, head_out), 128)
    bias = jnp.zeros((3, pad_w), jnp.float32)
    bias = bias.at[0, :hidden1].set(jnp.asarray(b1, jnp.float32))
    bias = bias.at[1, :hidden2].set(jnp.asarray(b2, jnp.float32))
    bias = bias.at[2, :head_out].set(bh)

    return {
        "w1": jnp.asarray(w1, jnp.float32).T.astype(matmul_dtype),  # (obs, h1)
        "w2": jnp.asarray(w2, jnp.float32).T.astype(matmul_dtype),  # (h1, h2)
        "wh": wh.astype(matmul_dtype),                               # (h2, head_out)
        "bias": bias,                                                # (3, padW)
        "logstd_param": logstd_param,
        "use_std_parameter": use_std_parameter,
        "hidden1": hidden1,
        "hidden2": hidden2,
        "action": action,
        "head_out": head_out,
    }


def _pick_tile_b(batch, obs_dim, hidden_max, out_width, x_itemsize,
                 mm_itemsize, resident_bytes, vmem_budget):
    # Target an even grid of >= 2 steps: shards the batch across both v7x
    # TensorCores via ("parallel",) and gives single-core chips DMA/compute
    # overlap; beyond that, keep tiles as large as the VMEM budget allows
    # (per-grid-step overhead dominates this tiny kernel).
    tile = min(_round_up(max(pl.cdiv(batch, 2), 8), 8),
               _TILE_B_MAX,
               _round_up(batch, 8))

    def vmem_est(tb):
        x_bytes = 2 * tb * obs_dim * x_itemsize           # double-buffered x
        out_bytes = 2 * tb * out_width * 4                 # double-buffered out
        # live intermediates: h (f32 + matmul-dtype copy) and heads/merged
        act_bytes = tb * hidden_max * (4 + mm_itemsize) + tb * out_width * 4
        return x_bytes + out_bytes + act_bytes + resident_bytes

    while tile > 8 and vmem_est(tile) > vmem_budget:
        tile = max(8, _round_up(tile // 2, 8))
    return tile


def normal_policy_forward(x, prep, *, min_logstd=-20.0, max_logstd=2.0):
    """Returns (mu, tanh(mu), clipped_logstd) like NormalPolicy.forward."""
    batch, obs_dim = x.shape
    action = prep["action"]
    head_out = prep["head_out"]
    compute_logstd = not prep["use_std_parameter"]
    n_out = 3 if compute_logstd else 2
    out_width = _round_up(n_out * action, 128)

    resident_bytes = (prep["w1"].nbytes + prep["w2"].nbytes
                      + prep["wh"].nbytes + prep["bias"].nbytes)
    vmem_budget = _vmem_budget_bytes()
    tile_b = _pick_tile_b(
        batch, obs_dim, max(prep["hidden1"], prep["hidden2"]), out_width,
        jnp.dtype(x.dtype).itemsize, jnp.dtype(prep["w1"].dtype).itemsize,
        resident_bytes, vmem_budget)
    grid = (pl.cdiv(batch, tile_b),)

    kernel = functools.partial(
        _normal_policy_kernel,
        hidden1=prep["hidden1"], hidden2=prep["hidden2"], action=action,
        head_out=head_out, out_width=out_width, compute_logstd=compute_logstd,
        min_logstd=float(min_logstd), max_logstd=float(max_logstd))

    flops = 2 * batch * (obs_dim * prep["hidden1"]
                         + prep["hidden1"] * prep["hidden2"]
                         + prep["hidden2"] * head_out)
    bytes_accessed = (batch * obs_dim * jnp.dtype(x.dtype).itemsize
                      + resident_bytes + batch * out_width * 4)

    def resident_spec(shape):
        # Constant index_map -> single pipeline buffer is enough.
        return pl.BlockSpec(shape, lambda i: (0, 0),
                            pipeline_mode=pl.Buffered(1))

    merged = pl.pallas_call(
        kernel,
        out_shape=jax.ShapeDtypeStruct((batch, out_width), jnp.float32),
        grid=grid,
        in_specs=[
            pl.BlockSpec((tile_b, obs_dim), lambda i: (i, 0)),  # streamed x
            resident_spec(prep["w1"].shape),
            resident_spec(prep["w2"].shape),
            resident_spec(prep["wh"].shape),
            resident_spec(prep["bias"].shape),
        ],
        out_specs=pl.BlockSpec((tile_b, out_width), lambda i: (i, 0)),
        compiler_params=pltpu.CompilerParams(
            dimension_semantics=("parallel",),
            vmem_limit_bytes=int(vmem_budget)),
        cost_estimate=pl.CostEstimate(
            flops=flops, transcendentals=batch * action,
            bytes_accessed=bytes_accessed),
    )(x, prep["w1"], prep["w2"], prep["wh"], prep["bias"])

    mu = merged[:, :action]
    squashed = merged[:, action:2 * action]
    if compute_logstd:
        clipped = merged[:, 2 * action:3 * action]
    else:
        # logstd is a learned (1, action) parameter; tiny sigmoid rescale runs
        # in plain JAX (no value in a kernel).
        clipped = min_logstd + jax.nn.sigmoid(prep["logstd_param"]) * (
            max_logstd - min_logstd)
    return mu, squashed, clipped


def init_params(key, obs_dim, hidden_size, action_size, *,
                use_std_parameter=False):
    """PyTorch-style init; weights in PyTorch (out, in) layout."""
    ks = jax.random.split(key, 8)

    def linear_init(kw, kb, fan_in, fan_out):
        bound = 1.0 / jnp.sqrt(fan_in)
        w = jax.random.uniform(kw, (fan_out, fan_in), jnp.float32, -bound, bound)
        b = jax.random.uniform(kb, (fan_out,), jnp.float32, -bound, bound)
        return w, b

    w1, b1 = linear_init(ks[0], ks[1], obs_dim, hidden_size)
    w2, b2 = linear_init(ks[2], ks[3], hidden_size, hidden_size)
    wmu, bmu = linear_init(ks[4], ks[5], hidden_size, action_size)
    if use_std_parameter:
        logstd = jnp.zeros((1, action_size), jnp.float32)
        return (w1, b1, w2, b2, wmu, bmu, logstd)
    wls, bls = linear_init(ks[6], ks[7], hidden_size, action_size)
    return (w1, b1, w2, b2, wmu, bmu, wls, bls)


def _ref_forward(x, torch_params, *, use_std_parameter, min_logstd, max_logstd,
                 matmul_dtype=jnp.float32):
    """Plain-JAX reference with matching matmul dtype / f32 accumulation."""
    def lin(h, w, b):
        return jnp.dot(h.astype(matmul_dtype),
                       jnp.asarray(w, jnp.float32).T.astype(matmul_dtype),
                       preferred_element_type=jnp.float32,
                       precision=lax.Precision.HIGHEST
                       ) + jnp.asarray(b, jnp.float32)

    if use_std_parameter:
        w1, b1, w2, b2, wmu, bmu, logstd_param = torch_params
    else:
        w1, b1, w2, b2, wmu, bmu, wls, bls = torch_params
    h = jnp.maximum(lin(x, w1, b1), 0.0)
    h = jnp.maximum(lin(h, w2, b2), 0.0)
    mu = lin(h, wmu, bmu)
    if use_std_parameter:
        clipped = min_logstd + jax.nn.sigmoid(logstd_param) * (
            max_logstd - min_logstd)
    else:
        clipped = jnp.clip(lin(h, wls, bls), min_logstd, max_logstd)
    return mu, jnp.tanh(mu), clipped


if __name__ == "__main__":
    key = jax.random.PRNGKey(0)
    k_x, k_p1, k_p2 = jax.random.split(key, 3)

    batch, obs_dim, hidden_size, action_size = 256, 16, 32, 8
    min_logstd, max_logstd = -20.0, 2.0
    x = jax.random.normal(k_x, (batch, obs_dim), jnp.float32)

    # --- use_std_parameter=False: logstd Linear head fused into the kernel ---
    tp = init_params(k_p1, obs_dim, hidden_size, action_size,
                     use_std_parameter=False)
    prep = prepare_params(tp, use_std_parameter=False)
    mu, sq, ls = normal_policy_forward(x, prep, min_logstd=min_logstd,
                                       max_logstd=max_logstd)
    jax.block_until_ready((mu, sq, ls))
    mu_r, sq_r, ls_r = _ref_forward(x, tp, use_std_parameter=False,
                                    min_logstd=min_logstd,
                                    max_logstd=max_logstd)
    assert jnp.allclose(mu, mu_r, atol=1e-4, rtol=1e-4), "mu mismatch"
    assert jnp.allclose(sq, sq_r, atol=1e-4, rtol=1e-4), "tanh(mu) mismatch"
    assert jnp.allclose(ls, ls_r, atol=1e-4, rtol=1e-4), "logstd mismatch"

    # --- use_std_parameter=True: logstd is a learned (1, action) parameter ---
    tp2 = init_params(k_p2, obs_dim, hidden_size, action_size,
                      use_std_parameter=True)
    prep2 = prepare_params(tp2, use_std_parameter=True)
    mu2, sq2, ls2 = normal_policy_forward(x, prep2, min_logstd=min_logstd,
                                          max_logstd=max_logstd)
    jax.block_until_ready((mu2, sq2, ls2))
    mu2_r, sq2_r, ls2_r = _ref_forward(x, tp2, use_std_parameter=True,
                                       min_logstd=min_logstd,
                                       max_logstd=max_logstd)
    assert jnp.allclose(mu2, mu2_r, atol=1e-4, rtol=1e-4), "mu mismatch (param)"
    assert jnp.allclose(sq2, sq2_r, atol=1e-4, rtol=1e-4), "tanh mismatch (param)"
    assert jnp.allclose(ls2, ls2_r, atol=1e-6), "logstd mismatch (param)"

    print("KERNEL_OK")
</pallas_src>

<mosaic_0001>
module attributes {stable_mosaic.version = 11 : i64} {
  func.func @_normal_policy_kernel(%arg0: i32, %arg1: memref<128x16xf32, #tpu.memory_space<vmem>>, %arg2: memref<16x32xf32, #tpu.memory_space<vmem>>, %arg3: memref<32x32xf32, #tpu.memory_space<vmem>>, %arg4: memref<32x16xf32, #tpu.memory_space<vmem>>, %arg5: memref<3x128xf32, #tpu.memory_space<vmem>>, %arg6: memref<128x128xf32, #tpu.memory_space<vmem>>) attributes {dimension_semantics = [#tpu.dimension_semantics<parallel>], iteration_bounds = array<i64: 2>, scalar_prefetch = 0 : i64, scratch_operands = 0 : i64, tpu.core_type = #tpu.core_type<tc>, window_params = [{transform_indices = @transform_0, window_bounds = array<i64: 128, 16>}, {pipeline_mode = #tpu.pipeline_mode<synchronous>, transform_indices = @transform_1, window_bounds = array<i64: 16, 32>}, {pipeline_mode = #tpu.pipeline_mode<synchronous>, transform_indices = @transform_2, window_bounds = array<i64: 32, 32>}, {pipeline_mode = #tpu.pipeline_mode<synchronous>, transform_indices = @transform_3, window_bounds = array<i64: 32, 16>}, {pipeline_mode = #tpu.pipeline_mode<synchronous>, transform_indices = @transform_4, window_bounds = array<i64: 3, 128>}, {transform_indices = @transform_5, window_bounds = array<i64: 128, 128>}]} {
    %c0 = arith.constant 0 : index
    %c0_0 = arith.constant 0 : index
    %0 = vector.load %arg5[%c0, %c0_0] : memref<3x128xf32, #tpu.memory_space<vmem>>, vector<1x32xf32>
    %c1 = arith.constant 1 : index
    %c0_1 = arith.constant 0 : index
    %1 = vector.load %arg5[%c1, %c0_1] : memref<3x128xf32, #tpu.memory_space<vmem>>, vector<1x32xf32>
    %c2 = arith.constant 2 : index
    %c0_2 = arith.constant 0 : index
    %2 = vector.load %arg5[%c2, %c0_2] : memref<3x128xf32, #tpu.memory_space<vmem>>, vector<1x16xf32>
    %c0_3 = arith.constant 0 : index
    %c0_4 = arith.constant 0 : index
    %3 = vector.load %arg1[%c0_3, %c0_4] : memref<128x16xf32, #tpu.memory_space<vmem>>, vector<128x16xf32>
    %c0_5 = arith.constant 0 : index
    %c0_6 = arith.constant 0 : index
    %4 = vector.load %arg2[%c0_5, %c0_6] : memref<16x32xf32, #tpu.memory_space<vmem>>, vector<16x32xf32>
    %cst = arith.constant dense<0.000000e+00> : vector<128x32xf32>
    %5 = tpu.matmul %3, %4, %cst {dimension_numbers = #tpu.dot_dimension_numbers<[1], [0], [0], [1], [0, 0, 1, 1], [], []>} : vector<128x16xf32>, vector<16x32xf32>, vector<128x32xf32> -> vector<128x32xf32>
    %6 = vector.broadcast %0 : vector<1x32xf32> to vector<128x32xf32>
    %7 = arith.addf %5, %6 : vector<128x32xf32>
    %cst_7 = arith.constant 0.000000e+00 : f32
    %8 = vector.broadcast %cst_7 : f32 to vector<128x32xf32>
    %9 = arith.maximumf %7, %8 : vector<128x32xf32>
    %c0_8 = arith.constant 0 : index
    %c0_9 = arith.constant 0 : index
    %10 = vector.load %arg3[%c0_8, %c0_9] : memref<32x32xf32, #tpu.memory_space<vmem>>, vector<32x32xf32>
    %cst_10 = arith.constant dense<0.000000e+00> : vector<128x32xf32>
    %11 = tpu.matmul %9, %10, %cst_10 {dimension_numbers = #tpu.dot_dimension_numbers<[1], [0], [0], [1], [0, 0, 1, 1], [], []>} : vector<128x32xf32>, vector<32x32xf32>, vector<128x32xf32> -> vector<128x32xf32>
    %12 = vector.broadcast %1 : vector<1x32xf32> to vector<128x32xf32>
    %13 = arith.addf %11, %12 : vector<128x32xf32>
    %cst_11 = arith.constant 0.000000e+00 : f32
    %14 = vector.broadcast %cst_11 : f32 to vector<128x32xf32>
    %15 = arith.maximumf %13, %14 : vector<128x32xf32>
    %c0_12 = arith.constant 0 : index
    %c0_13 = arith.constant 0 : index
    %16 = vector.load %arg4[%c0_12, %c0_13] : memref<32x16xf32, #tpu.memory_space<vmem>>, vector<32x16xf32>
    %cst_14 = arith.constant dense<0.000000e+00> : vector<128x16xf32>
    %17 = tpu.matmul %15, %16, %cst_14 {dimension_numbers = #tpu.dot_dimension_numbers<[1], [0], [0], [1], [0, 0, 1, 1], [], []>} : vector<128x32xf32>, vector<32x16xf32>, vector<128x16xf32> -> vector<128x16xf32>
    %18 = vector.broadcast %2 : vector<1x16xf32> to vector<128x16xf32>
    %19 = arith.addf %17, %18 : vector<128x16xf32>
    %20 = vector.extract_strided_slice %19 {offsets = [0, 0], sizes = [128, 8], strides = [1, 1]} : vector<128x16xf32> to vector<128x8xf32>
    %21 = math.tanh %20 : vector<128x8xf32>
    %22 = vector.extract_strided_slice %19 {offsets = [0, 8], sizes = [128, 8], strides = [1, 1]} : vector<128x16xf32> to vector<128x8xf32>
    %cst_15 = arith.constant -2.000000e+01 : f32
    %cst_16 = arith.constant 2.000000e+00 : f32
    %23 = vector.broadcast %cst_15 : f32 to vector<128x8xf32>
    %24 = arith.maximumf %23, %22 : vector<128x8xf32>
    %25 = vector.broadcast %cst_16 : f32 to vector<128x8xf32>
    %26 = arith.minimumf %25, %24 : vector<128x8xf32>
    %cst_17 = arith.constant 0.000000e+00 : f32
    %27 = vector.broadcast %cst_17 : f32 to vector<128x104xf32>
    %28 = tpu.concatenate %20, %21, %26, %27 in 1 : vector<128x8xf32>, vector<128x8xf32>, vector<128x8xf32>, vector<128x104xf32> -> vector<128x128xf32>
    %c0_18 = arith.constant 0 : index
    %c0_19 = arith.constant 0 : index
    %29 = vector.load %arg6[%c0_18, %c0_19] : memref<128x128xf32, #tpu.memory_space<vmem>>, vector<128x128xf32>
    tpu.vector_store %arg6[%c0_18, %c0_19], %28 {strides = array<i32>} : memref<128x128xf32, #tpu.memory_space<vmem>>, vector<128x128xf32>,
    return
  }
  func.func @transform_0(%arg0: i32) -> (i32, i32) {
    %c0_i32 = arith.constant 0 : i32
    %c0_i32_0 = arith.constant 0 : i32
    return %arg0, %c0_i32 : i32, i32
  }
  func.func @transform_1(%arg0: i32) -> (i32, i32) {
    %c0_i32 = arith.constant 0 : i32
    %c0_i32_0 = arith.constant 0 : i32
    %c0_i32_1 = arith.constant 0 : i32
    return %c0_i32, %c0_i32_0 : i32, i32
  }
  func.func @transform_2(%arg0: i32) -> (i32, i32) {
    %c0_i32 = arith.constant 0 : i32
    %c0_i32_0 = arith.constant 0 : i32
    %c0_i32_1 = arith.constant 0 : i32
    return %c0_i32, %c0_i32_0 : i32, i32
  }
  func.func @transform_3(%arg0: i32) -> (i32, i32) {
    %c0_i32 = arith.constant 0 : i32
    %c0_i32_0 = arith.constant 0 : i32
    %c0_i32_1 = arith.constant 0 : i32
    return %c0_i32, %c0_i32_0 : i32, i32
  }
  func.func @transform_4(%arg0: i32) -> (i32, i32) {
    %c0_i32 = arith.constant 0 : i32
    %c0_i32_0 = arith.constant 0 : i32
    %c0_i32_1 = arith.constant 0 : i32
    return %c0_i32, %c0_i32_0 : i32, i32
  }
  func.func @transform_5(%arg0: i32) -> (i32, i32) {
    %c0_i32 = arith.constant 0 : i32
    %c0_i32_0 = arith.constant 0 : i32
    return %arg0, %c0_i32 : i32, i32
  }
}

</mosaic_0001>

<llo_original>
// kernel: tpu_custom_call.1
$region0: #{tpu_custom_call.1}
  #allocation0 [shape = 'u32[]', space=smem, size = 0x4, offset = 0x4, fixed_abs, tag = 'smem constant byte address 0x4 - core index']
  #allocation1 [shape = 'u32[144,128]{1,0:T(1,128)}', space=vmem, size = 0x12000, scoped, tag = 'internal scratch']
  %s0 = inlined_call_operand.vmem [shape: f32[256,16], index: 0, kind: input, shape index: {}]
  %s1 = inlined_call_operand.vmem [shape: f32[16,32], index: 1, kind: input, shape index: {}]
  %s2 = inlined_call_operand.vmem [shape: f32[32,32], index: 2, kind: input, shape index: {}]
  %s3 = inlined_call_operand.vmem [shape: f32[32,16], index: 3, kind: input, shape index: {}]
  %s4 = inlined_call_operand.vmem [shape: f32[3,128], index: 4, kind: input, shape index: {}]
  %s5 = inlined_call_operand.hbm [shape: f32[256,128], index: 5, kind: output, shape index: {}]
  %s6 = sld [smem:[#allocation0]]
  $region53: #{tpu_custom_call.1} parent=0
    _
  %s8 = ssub.s32 1, %s6
  %s9 = scalar_select 0, %s8, %s6
  $region1: #{tpu_custom_call.1} parent=0
    #allocation2 [shape = 'u8[131072]{0}', space=vmem, size = 0x20000, scoped, tag = 'output window, operand 0']
    #allocation3 [shape = 's32[2]{0}', space=sflag, size = 0x8, scoped, tag = 'scoped memory for tpu_custom_call.1']
    %10 = vsyncpa [#allocation3], 0
    %s11 = scalar_lea.sflag [#allocation3], 1
    %12 = vsyncpa %s11, 0
    loop: start=0, step=1, limit=4
    $region2: #{tpu_custom_call.1} parent=1 // loop_pre_header
      _
    $region3: #{tpu_custom_call.1} parent=1 // loop_header
      %s14 = sphi 0, %s18
      %p15 = scmp.ge.s32.totalorder %s14, 4
      %s24 = sphi 0, %s26
      %s27 = sphi 0, %s24
      %s28 = sphi 0, %s27
      %s44 = sphi 0, %s28
      %s48 = sphi 0, %s48
      %s50 = sphi 0, %s48
      %s51 = sphi 0, %s50
      %s65 = sphi 0, %s51
      %s69 = sphi 0, %s69
      %s71 = sphi 0, %s69
      %s72 = sphi 0, %s71
      %s86 = sphi 0, %s72
      %s90 = sphi 0, %s90
      %s92 = sphi 0, %s90
      %s93 = sphi 0, %s92
      %s107 = sphi 0, %s93
      %s111 = sphi 0, %s111
      %s113 = sphi 0, %s111
      %s114 = sphi 0, %s113
      %s128 = sphi 0, %s114
      %s134 = sphi 0, %s136
      %s137 = sphi 0, %s134
      %s138 = sphi 0, %s137
      %s154 = sphi 0, %s138
    $region4: #{tpu_custom_call.1} parent=1 // loop_header_branch
      %17 = sbr.rel (%p15) target = $region8
    $region5: #{tpu_custom_call.1} parent=1 // loop_body
      %s19 = ssub.s32 %s14, 1
      %s20 = ssub.s32 %s14, 2
      %s21 = sadd.s32 %s14, 1
      %s22 = ssub.s32 %s14, %s21
      %p23 = scmp.eq.s32.totalorder %s22, 0
      %s25 = sadd.s32 %s24, 1
      %s26 = scalar_select %p23, %s24, %s25
      %p29 = pneg %p23
      %p30 = scmp.eq.s32.totalorder %s14, 1
      %p31 = por %p29, %p30
      %p32 = scmp.ne.s32.totalorder %s24, %s27
      %p33 = scmp.eq.s32.totalorder %s14, 0
      %p34 = por %p32, %p33
      %p35 = scmp.ne.s32.totalorder %s24, %s27
      %p36 = scmp.eq.s32.totalorder %s19, 1
      %p37 = por %p35, %p36
      %p38 = scmp.ne.s32.totalorder %s27, %s28
      %p39 = scmp.eq.s32.totalorder %s19, 0
      %p40 = por %p38, %p39
      %p41 = scmp.ne.s32.totalorder %s27, %s28
      %p42 = scmp.eq.s32.totalorder %s20, 1
      %p43 = por %p41, %p42
      %p45 = scmp.ne.s32.totalorder %s28, %s44
      %p46 = scmp.eq.s32.totalorder %s20, 0
      %p47 = por %p45, %p46
      %s49 = sadd.s32 %s48, 1
      %p52 = scmp.eq.s32.totalorder %s14, 1
      %p53 = scmp.ne.s32.totalorder %s48, %s50
      %p54 = scmp.eq.s32.totalorder %s14, 0
      %p55 = por %p53, %p54
      %p56 = scmp.ne.s32.totalorder %s48, %s50
      %p57 = scmp.eq.s32.totalorder %s19, 1
      %p58 = por %p56, %p57
      %p59 = scmp.ne.s32.totalorder %s50, %s51
      %p60 = scmp.eq.s32.totalorder %s19, 0
      %p61 = por %p59, %p60
      %p62 = scmp.ne.s32.totalorder %s50, %s51
      %p63 = scmp.eq.s32.totalorder %s20, 1
      %p64 = por %p62, %p63
      %p66 = scmp.ne.s32.totalorder %s51, %s65
      %p67 = scmp.eq.s32.totalorder %s20, 0
      %p68 = por %p66, %p67
      %s70 = sadd.s32 %s69, 1
      %p73 = scmp.eq.s32.totalorder %s14, 1
      %p74 = scmp.ne.s32.totalorder %s69, %s71
      %p75 = scmp.eq.s32.totalorder %s14, 0
      %p76 = por %p74, %p75
      %p77 = scmp.ne.s32.totalorder %s69, %s71
      %p78 = scmp.eq.s32.totalorder %s19, 1
      %p79 = por %p77, %p78
      %p80 = scmp.ne.s32.totalorder %s71, %s72
      %p81 = scmp.eq.s32.totalorder %s19, 0
      %p82 = por %p80, %p81
      %p83 = scmp.ne.s32.totalorder %s71, %s72
      %p84 = scmp.eq.s32.totalorder %s20, 1
      %p85 = por %p83, %p84
      %p87 = scmp.ne.s32.totalorder %s72, %s86
      %p88 = scmp.eq.s32.totalorder %s20, 0
      %p89 = por %p87, %p88
      %s91 = sadd.s32 %s90, 1
      %p94 = scmp.eq.s32.totalorder %s14, 1
      %p95 = scmp.ne.s32.totalorder %s90, %s92
      %p96 = scmp.eq.s32.totalorder %s14, 0
      %p97 = por %p95, %p96
      %p98 = scmp.ne.s32.totalorder %s90, %s92
      %p99 = scmp.eq.s32.totalorder %s19, 1
      %p100 = por %p98, %p99
      %p101 = scmp.ne.s32.totalorder %s92, %s93
      %p102 = scmp.eq.s32.totalorder %s19, 0
      %p103 = por %p101, %p102
      %p104 = scmp.ne.s32.totalorder %s92, %s93
      %p105 = scmp.eq.s32.totalorder %s20, 1
      %p106 = por %p104, %p105
      %p108 = scmp.ne.s32.totalorder %s93, %s107
      %p109 = scmp.eq.s32.totalorder %s20, 0
      %p110 = por %p108, %p109
      %s112 = sadd.s32 %s111, 1
      %p115 = scmp.eq.s32.totalorder %s14, 1
      %p116 = scmp.ne.s32.totalorder %s111, %s113
      %p117 = scmp.eq.s32.totalorder %s14, 0
      %p118 = por %p116, %p117
      %p119 = scmp.ne.s32.totalorder %s111, %s113
      %p120 = scmp.eq.s32.totalorder %s19, 1
      %p121 = por %p119, %p120
      %p122 = scmp.ne.s32.totalorder %s113, %s114
      %p123 = scmp.eq.s32.totalorder %s19, 0
      %p124 = por %p122, %p123
      %p125 = scmp.ne.s32.totalorder %s113, %s114
      %p126 = scmp.eq.s32.totalorder %s20, 1
      %p127 = por %p125, %p126
      %p129 = scmp.ne.s32.totalorder %s114, %s128
      %p130 = scmp.eq.s32.totalorder %s20, 0
      %p131 = por %p129, %p130
      %s132 = ssub.s32 %s14, %s21
      %p133 = scmp.eq.s32.totalorder %s132, 0
      %s135 = sadd.s32 %s134, 1
      %s136 = scalar_select %p133, %s134, %s135
      %p139 = pneg %p133
      %p140 = scmp.eq.s32.totalorder %s14, 1
      %p141 = por %p139, %p140
      %p142 = scmp.ne.s32.totalorder %s134, %s137
      %p143 = scmp.eq.s32.totalorder %s14, 0
      %p144 = por %p142, %p143
      %p145 = scmp.ne.s32.totalorder %s134, %s137
      %p146 = scmp.eq.s32.totalorder %s19, 1
      %p147 = por %p145, %p146
      %p148 = scmp.ne.s32.totalorder %s137, %s138
      %p149 = scmp.eq.s32.totalorder %s19, 0
      %p150 = por %p148, %p149
      %p151 = scmp.ne.s32.totalorder %s137, %s138
      %p152 = scmp.eq.s32.totalorder %s20, 1
      %p153 = por %p151, %p152
      %p155 = scmp.ne.s32.totalorder %s138, %s154
      %p156 = scmp.eq.s32.totalorder %s20, 0
      %p157 = por %p155, %p156
      %p158 = scmp.le.s32.totalorder 1, %s14
      %p159 = scmp.lt.s32.totalorder %s14, 3
      %p160 = pnand %p158, %p159
      %p161 = pneg %p160
      // Predicated region
      $region9: #{tpu_custom_call.1} parent=5 // pred_check
        _
      $region10: #{tpu_custom_call.1} parent=5 // pred_check_branch
        %163 = sbr.rel (%p160) target = $region12
      $region11: #{tpu_custom_call.1} parent=5 // pred_region
        %s164 = ssub.s32 %s14, 1
        // Predicated region
        $region13: #{tpu_custom_call.1} parent=11 // pred_check
          %p165 = pneg %p61
        $region14: #{tpu_custom_call.1} parent=11 // pred_check_branch
          %167 = sbr.rel (%p165) target = $region16
        $region15: #{tpu_custom_call.1} parent=11 // pred_region
          _
        $region16: #{tpu_custom_call.1} parent=11 // pred_fallthru
          _
        // Predicated region
        $region17: #{tpu_custom_call.1} parent=11 // pred_check
          %p168 = pneg %p82
        $region18: #{tpu_custom_call.1} parent=11 // pred_check_branch
          %170 = sbr.rel (%p168) target = $region20
        $region19: #{tpu_custom_call.1} parent=11 // pred_region
          _
        $region20: #{tpu_custom_call.1} parent=11 // pred_fallthru
          _
        // Predicated region
        $region21: #{tpu_custom_call.1} parent=11 // pred_check
          %p171 = pneg %p103
        $region22: #{tpu_custom_call.1} parent=11 // pred_check_branch
          %173 = sbr.rel (%p171) target = $region24
        $region23: #{tpu_custom_call.1} parent=11 // pred_region
          _
        $region24: #{tpu_custom_call.1} parent=11 // pred_fallthru
          _
        // Predicated region
        $region25: #{tpu_custom_call.1} parent=11 // pred_check
          %p174 = pneg %p124
        $region26: #{tpu_custom_call.1} parent=11 // pred_check_branch
          %176 = sbr.rel (%p174) target = $region28
        $region27: #{tpu_custom_call.1} parent=11 // pred_region
          _
        $region28: #{tpu_custom_call.1} parent=11 // pred_fallthru
          _
      $region12: #{tpu_custom_call.1} parent=5 // pred_fallthru
        _
      %p177 = scmp.lt.s32.totalorder %s14, 2
      // Predicated region
      $region29: #{tpu_custom_call.1} parent=5 // pred_check
        %p178 = pneg %p177
      $region30: #{tpu_custom_call.1} parent=5 // pred_check_branch
        %180 = sbr.rel (%p178) target = $region32
      $region31: #{tpu_custom_call.1} parent=5 // pred_region
        // Predicated region
        $region33: #{tpu_custom_call.1} parent=31 // pred_check
          %p181 = pneg %p34
        $region34: #{tpu_custom_call.1} parent=31 // pred_check_branch
          %183 = sbr.rel (%p181) target = $region36
        $region35: #{tpu_custom_call.1} parent=31 // pred_region
          %s184 = smul.u32 16, %s14
          %p185 = scmp.lt.s32.totalorder %s184, 31
          %s186 = scalar_select %p185, %s184, 31
          %s187 = smul.addr %s186, 8
          %s188 = scalar_lea.vmem %s0, %s187
          %s189 = smul.u32 16, %s14
        $region36: #{tpu_custom_call.1} parent=31 // pred_fallthru
          _
      $region32: #{tpu_custom_call.1} parent=5 // pred_fallthru
        _
      %p190 = scmp.le.s32.totalorder 1, %s14
      %p191 = scmp.lt.s32.totalorder %s14, 3
      %p192 = pnand %p190, %p191
      %p193 = pneg %p192
      // Predicated region
      $region37: #{tpu_custom_call.1} parent=5 // pred_check
        _
      $region38: #{tpu_custom_call.1} parent=5 // pred_check_branch
        %195 = sbr.rel (%p192) target = $region40
      $region39: #{tpu_custom_call.1} parent=5 // pred_region
        %s196 = ssub.s32 %s14, 1
        %s197 = smul.u32 16, %s19
        %p198 = scmp.lt.s32.totalorder %s197, 31
        %s199 = scalar_select %p198, %s197, 31
        %s200 = smul.addr %s199, 8
        %s201 = scalar_lea.vmem %s0, %s200
        %p202 = pneg %p40
        %p203 = pneg %p37
        %p204 = pneg %p61
        %p205 = pneg %p58
        %p206 = pneg %p82
        %p207 = pneg %p79
        %p208 = pneg %p103
        %p209 = pneg %p100
        %p210 = pneg %p124
        %p211 = pneg %p121
        %p212 = pneg %p150
        %p213 = pneg %p147
        %s214 = sand.u32 %s137, 1
        %s215 = scalar_lea.sflag [#allocation3], %s214
        %s216 = sand.u32 %s137, 1
        %s217 = smul.addr %s216, 128
        %s218 = scalar_lea.vmem [#allocation2], %s217
        %s219 = smul.u32 16, %s19
        %p220 = scmp.lt.s32.totalorder %s219, 31
        %s221 = scalar_select %p220, %s219, 31
        %s222 = smul.addr %s221, 8
        %s223 = scalar_lea.vmem %s0, %s222
        %s224 = smul.u32 16, %s19
        %s225 = smul.u32 16, %s19
        %v226 = vld [vmem:[%s4] sm:$0x1]
        %v227 = vld [vmem:[%s4 + $0x1] sm:$0x1]
        %v228 = vld [vmem:[%s4 + $0x2] sm:$0x1]
        %v229 = vld [vmem:[%s223] sm:$0xff]
        %v230 = vld [vmem:[%s223 + $0x8] sm:$0xff]
        %v231 = vld [vmem:[%s223 + $0x10] sm:$0xff]
        %v232 = vld [vmem:[%s223 + $0x18] sm:$0xff]
        %v233 = vld [vmem:[%s223 + $0x20] sm:$0xff]
        %v234 = vld [vmem:[%s223 + $0x28] sm:$0xff]
        %v235 = vld [vmem:[%s223 + $0x30] sm:$0xff]
        %v236 = vld [vmem:[%s223 + $0x38] sm:$0xff]
        %v237 = vld [vmem:[%s223 + $0x40] sm:$0xff]
        %v238 = vld [vmem:[%s223 + $0x48] sm:$0xff]
        %v239 = vld [vmem:[%s223 + $0x50] sm:$0xff]
        %v240 = vld [vmem:[%s223 + $0x58] sm:$0xff]
        %v241 = vld [vmem:[%s223 + $0x60] sm:$0xff]
        %v242 = vld [vmem:[%s223 + $0x68] sm:$0xff]
        %v243 = vld [vmem:[%s223 + $0x70] sm:$0xff]
        %v244 = vld [vmem:[%s223 + $0x78] sm:$0xff]
        %v245 = vld [vmem:[%s1] sm:$0xff]
        %v246 = vld [vmem:[%s1 + $0x8] sm:$0xff]
        %v247 = vlaneseq
        %v248 = vshrl.u32 %v247, 7
        %v249 = vsub.s32 0, %v248
        %v250 = vrot.slane %v226, %v249
        %vm251 = vcmask 130048
        %v253 = vsel %vm251, %v229, 0
        %v256 = vsel %vm251, %v230, 0
        %v259 = vsel %vm251, %v231, 0
        %v262 = vsel %vm251, %v232, 0
        %v265 = vsel %vm251, %v233, 0
        %v268 = vsel %vm251, %v234, 0
        %v271 = vsel %vm251, %v235, 0
        %v274 = vsel %vm251, %v236, 0
        %v277 = vsel %vm251, %v237, 0
        %v280 = vsel %vm251, %v238, 0
        %v283 = vsel %vm251, %v239, 0
        %v286 = vsel %vm251, %v240, 0
        %v289 = vsel %vm251, %v241, 0
        %v292 = vsel %vm251, %v242, 0
        %v295 = vsel %vm251, %v243, 0
        %v298 = vsel %vm251, %v244, 0
        %300 = vmatprep.subr.mxu0 0.0
        %301 = vmatpush1.msra.mxu0 %v245
        %302 = vmatprep.subr.mxu0 0.0
        %303 = vmatpush1.msra.mxu0 %v246
        %304 = vmatprep.subr.mxu0 0.0
        %305 = vmatpush1.msra.mxu0 0.0
        %306 = vmatprep.subr.mxu0 0.0
        %307 = vmatpush1.msra.mxu0 0.0
        %308 = vmatprep.subr.mxu0 0.0
        %309 = vmatpush1.msra.mxu0 0.0
        %310 = vmatprep.subr.mxu0 0.0
        %311 = vmatpush1.msra.mxu0 0.0
        %312 = vmatprep.subr.mxu0 0.0
        %313 = vmatpush1.msra.mxu0 0.0
        %314 = vmatprep.subr.mxu0 0.0
        %315 = vmatpush1.msra.mxu0 0.0
        %316 = vmatprep.subr.mxu0 0.0
        %317 = vmatpush1.msra.mxu0 0.0
        %318 = vmatprep.subr.mxu0 0.0
        %319 = vmatpush1.msra.mxu0 0.0
        %320 = vmatprep.subr.mxu0 0.0
        %321 = vmatpush1.msra.mxu0 0.0
        %322 = vmatprep.subr.mxu0 0.0
        %323 = vmatpush1.msra.mxu0 0.0
        %324 = vmatprep.subr.mxu0 0.0
        %325 = vmatpush1.msra.mxu0 0.0
        %326 = vmatprep.subr.mxu0 0.0
        %327 = vmatpush1.msra.mxu0 0.0
        %328 = vmatprep.subr.mxu0 0.0
        %329 = vmatpush1.msra.mxu0 0.0
        %330 = vmatprep.subr.mxu0 0.0
        %331 = vmatpush1.msra.mxu0 0.0
        %332 = vmatprep.subr.mxu0 0.0
        %333 = vmatpush1.msra.mxu0 0.0
        %334 = vmatprep.subr.mxu0 0.0
        %335 = vmatpush1.msra.mxu0 0.0
        %336 = vmatprep.subr.mxu0 0.0
        %337 = vmatpush1.msra.mxu0 0.0
        %338 = vmatprep.subr.mxu0 0.0
        %339 = vmatpush1.msra.mxu0 0.0
        %340 = vmatprep.subr.mxu0 0.0
        %341 = vmatpush1.msra.mxu0 0.0
        %342 = vmatprep.subr.mxu0 0.0
        %343 = vmatpush1.msra.mxu0 0.0
        %344 = vmatprep.subr.mxu0 0.0
        %345 = vmatpush1.msra.mxu0 0.0
        %346 = vmatprep.subr.mxu0 0.0
        %347 = vmatpush1.msra.mxu0 0.0
        %348 = vmatprep.subr.mxu0 0.0
        %349 = vmatpush1.msra.mxu0 0.0
        %350 = vmatprep.subr.mxu0 0.0
        %351 = vmatpush1.msra.mxu0 0.0
        %352 = vmatprep.subr.mxu0 0.0
        %353 = vmatpush1.msra.mxu0 0.0
        %354 = vmatprep.subr.mxu0 0.0
        %355 = vmatpush1.msra.mxu0 0.0
        %356 = vmatprep.subr.mxu0 0.0
        %357 = vmatpush1.msra.mxu0 0.0
        %358 = vmatprep.subr.mxu0 0.0
        %359 = vmatpush1.msra.mxu0 0.0
        %360 = vmatprep.subr.mxu0 0.0
        %361 = vmatpush1.msra.mxu0 0.0
        %362 = vmatprep.subr.mxu0 0.0
        %363 = vmatpush1.msra.mxu0 0.0
        %364 = vmatprep.mubr.f32.mxu0 0.0
        %365 = vmatmul.mubr.f32.gmra.mrb[0].mxu0 %v253
        %v366 = vpop.f32.mrb[0].mxu0
        %v367 = vadd.f32 %v250, %v366
        %v368 = vpop.f32.mrb[0].mxu0
        %369 = vmatprep.mubr.f32.mxu0 0.0
        %370 = vmatmul.mubr.f32.gmra.mrb[0].mxu0 %v256
        %v371 = vpop.f32.mrb[0].mxu0
        %v372 = vadd.f32 %v250, %v371
        %v373 = vpop.f32.mrb[0].mxu0
        %374 = vmatprep.mubr.f32.mxu0 0.0
        %375 = vmatmul.mubr.f32.gmra.mrb[0].mxu0 %v259
        %v376 = vpop.f32.mrb[0].mxu0
        %v377 = vadd.f32 %v250, %v376
        %v378 = vpop.f32.mrb[0].mxu0
        %379 = vmatprep.mubr.f32.mxu0 0.0
        %380 = vmatmul.mubr.f32.gmra.mrb[0].mxu0 %v262
        %v381 = vpop.f32.mrb[0].mxu0
        %v382 = vadd.f32 %v250, %v381
        %v383 = vpop.f32.mrb[0].mxu0
        %384 = vmatprep.mubr.f32.mxu0 0.0
        %385 = vmatmul.mubr.f32.gmra.mrb[0].mxu0 %v265
        %v386 = vpop.f32.mrb[0].mxu0
        %v387 = vadd.f32 %v250, %v386
        %v388 = vpop.f32.mrb[0].mxu0
        %389 = vmatprep.mubr.f32.mxu0 0.0
        %390 = vmatmul.mubr.f32.gmra.mrb[0].mxu0 %v268
        %v391 = vpop.f32.mrb[0].mxu0
        %v392 = vadd.f32 %v250, %v391
        %v393 = vpop.f32.mrb[0].mxu0
        %394 = vmatprep.mubr.f32.mxu0 0.0
        %395 = vmatmul.mubr.f32.gmra.mrb[0].mxu0 %v271
        %v396 = vpop.f32.mrb[0].mxu0
        %v397 = vadd.f32 %v250, %v396
        %v398 = vpop.f32.mrb[0].mxu0
        %399 = vmatprep.mubr.f32.mxu0 0.0
        %400 = vmatmul.mubr.f32.gmra.mrb[0].mxu0 %v274
        %v401 = vpop.f32.mrb[0].mxu0
        %v402 = vadd.f32 %v250, %v401
        %v403 = vpop.f32.mrb[0].mxu0
        %404 = vmatprep.mubr.f32.mxu0 0.0
        %405 = vmatmul.mubr.f32.gmra.mrb[0].mxu0 %v277
        %v406 = vpop.f32.mrb[0].mxu0
        %v407 = vadd.f32 %v250, %v406
        %v408 = vpop.f32.mrb[0].mxu0
        %409 = vmatprep.mubr.f32.mxu0 0.0
        %410 = vmatmul.mubr.f32.gmra.mrb[0].mxu0 %v280
        %v411 = vpop.f32.mrb[0].mxu0
        %v412 = vadd.f32 %v250, %v411
        %v413 = vpop.f32.mrb[0].mxu0
        %414 = vmatprep.mubr.f32.mxu0 0.0
        %415 = vmatmul.mubr.f32.gmra.mrb[0].mxu0 %v283
        %v416 = vpop.f32.mrb[0].mxu0
        %v417 = vadd.f32 %v250, %v416
        %v418 = vpop.f32.mrb[0].mxu0
        %419 = vmatprep.mubr.f32.mxu0 0.0
        %420 = vmatmul.mubr.f32.gmra.mrb[0].mxu0 %v286
        %v421 = vpop.f32.mrb[0].mxu0
        %v422 = vadd.f32 %v250, %v421
        %v423 = vpop.f32.mrb[0].mxu0
        %424 = vmatprep.mubr.f32.mxu0 0.0
        %425 = vmatmul.mubr.f32.gmra.mrb[0].mxu0 %v289
        %v426 = vpop.f32.mrb[0].mxu0
        %v427 = vadd.f32 %v250, %v426
        %v428 = vpop.f32.mrb[0].mxu0
        %429 = vmatprep.mubr.f32.mxu0 0.0
        %430 = vmatmul.mubr.f32.gmra.mrb[0].mxu0 %v292
        %v431 = vpop.f32.mrb[0].mxu0
        %v432 = vadd.f32 %v250, %v431
        %v433 = vpop.f32.mrb[0].mxu0
        %434 = vmatprep.mubr.f32.mxu0 0.0
        %435 = vmatmul.mubr.f32.gmra.mrb[0].mxu0 %v295
        %v436 = vpop.f32.mrb[0].mxu0
        %v437 = vadd.f32 %v250, %v436
        %v438 = vpop.f32.mrb[0].mxu0
        %439 = vmatprep.mubr.f32.mxu0 0.0
        %440 = vmatmul.mubr.f32.gmra.mrb[0].mxu0 %v298
        %v441 = vpop.f32.mrb[0].mxu0
        %v442 = vadd.f32 %v250, %v441
        %v443 = vpop.f32.mrb[0].mxu0
        %444 = vdwg.mxu0
        %v445 = vmax.f32 %v367, 0.0
        %v446 = vmax.f32 %v372, 0.0
        %v447 = vmax.f32 %v377, 0.0
        %v448 = vmax.f32 %v382, 0.0
        %v449 = vmax.f32 %v387, 0.0
        %v450 = vmax.f32 %v392, 0.0
        %v451 = vmax.f32 %v397, 0.0
        %v452 = vmax.f32 %v402, 0.0
        %v453 = vmax.f32 %v407, 0.0
        %v454 = vmax.f32 %v412, 0.0
        %v455 = vmax.f32 %v417, 0.0
        %v456 = vmax.f32 %v422, 0.0
        %v457 = vmax.f32 %v427, 0.0
        %v458 = vmax.f32 %v432, 0.0
        %v459 = vmax.f32 %v437, 0.0
        %v460 = vmax.f32 %v442, 0.0
        %v461 = vld [vmem:[%s2] sm:$0xff]
        %v462 = vld [vmem:[%s2 + $0x8] sm:$0xff]
        %v463 = vld [vmem:[%s2 + $0x10] sm:$0xff]
        %v464 = vld [vmem:[%s2 + $0x18] sm:$0xff]
        %v465 = vlaneseq
        %v466 = vshrl.u32 %v465, 7
        %v467 = vsub.s32 0, %v466
        %v468 = vrot.slane %v227, %v467
        %vm469 = vcmask 261120
        %v471 = vsel %vm469, %v445, 0
        %v474 = vsel %vm469, %v446, 0
        %v477 = vsel %vm469, %v447, 0
        %v480 = vsel %vm469, %v448, 0
        %v483 = vsel %vm469, %v449, 0
        %v486 = vsel %vm469, %v450, 0
        %v489 = vsel %vm469, %v451, 0
        %v492 = vsel %vm469, %v452, 0
        %v495 = vsel %vm469, %v453, 0
        %v498 = vsel %vm469, %v454, 0
        %v501 = vsel %vm469, %v455, 0
        %v504 = vsel %vm469, %v456, 0
        %v507 = vsel %vm469, %v457, 0
        %v510 = vsel %vm469, %v458, 0
        %v513 = vsel %vm469, %v459, 0
        %v516 = vsel %vm469, %v460, 0
        %518 = vmatprep.subr.mxu0 0.0
        %519 = vmatpush1.msra.mxu0 %v461
        %520 = vmatprep.subr.mxu0 0.0
        %521 = vmatpush1.msra.mxu0 %v462
        %522 = vmatprep.subr.mxu0 0.0
        %523 = vmatpush1.msra.mxu0 %v463
        %524 = vmatprep.subr.mxu0 0.0
        %525 = vmatpush1.msra.mxu0 %v464
        %526 = vmatprep.subr.mxu0 0.0
        %527 = vmatpush1.msra.mxu0 0.0
        %528 = vmatprep.subr.mxu0 0.0
        %529 = vmatpush1.msra.mxu0 0.0
        %530 = vmatprep.subr.mxu0 0.0
        %531 = vmatpush1.msra.mxu0 0.0
        %532 = vmatprep.subr.mxu0 0.0
        %533 = vmatpush1.msra.mxu0 0.0
        %534 = vmatprep.subr.mxu0 0.0
        %535 = vmatpush1.msra.mxu0 0.0
        %536 = vmatprep.subr.mxu0 0.0
        %537 = vmatpush1.msra.mxu0 0.0
        %538 = vmatprep.subr.mxu0 0.0
        %539 = vmatpush1.msra.mxu0 0.0
        %540 = vmatprep.subr.mxu0 0.0
        %541 = vmatpush1.msra.mxu0 0.0
        %542 = vmatprep.subr.mxu0 0.0
        %543 = vmatpush1.msra.mxu0 0.0
        %544 = vmatprep.subr.mxu0 0.0
        %545 = vmatpush1.msra.mxu0 0.0
        %546 = vmatprep.subr.mxu0 0.0
        %547 = vmatpush1.msra.mxu0 0.0
        %548 = vmatprep.subr.mxu0 0.0
        %549 = vmatpush1.msra.mxu0 0.0
        %550 = vmatprep.subr.mxu0 0.0
        %551 = vmatpush1.msra.mxu0 0.0
        %552 = vmatprep.subr.mxu0 0.0
        %553 = vmatpush1.msra.mxu0 0.0
        %554 = vmatprep.subr.mxu0 0.0
        %555 = vmatpush1.msra.mxu0 0.0
        %556 = vmatprep.subr.mxu0 0.0
        %557 = vmatpush1.msra.mxu0 0.0
        %558 = vmatprep.subr.mxu0 0.0
        %559 = vmatpush1.msra.mxu0 0.0
        %560 = vmatprep.subr.mxu0 0.0
        %561 = vmatpush1.msra.mxu0 0.0
        %562 = vmatprep.subr.mxu0 0.0
        %563 = vmatpush1.msra.mxu0 0.0
        %564 = vmatprep.subr.mxu0 0.0
        %565 = vmatpush1.msra.mxu0 0.0
        %566 = vmatprep.subr.mxu0 0.0
        %567 = vmatpush1.msra.mxu0 0.0
        %568 = vmatprep.subr.mxu0 0.0
        %569 = vmatpush1.msra.mxu0 0.0
        %570 = vmatprep.subr.mxu0 0.0
        %571 = vmatpush1.msra.mxu0 0.0
        %572 = vmatprep.subr.mxu0 0.0
        %573 = vmatpush1.msra.mxu0 0.0
        %574 = vmatprep.subr.mxu0 0.0
        %575 = vmatpush1.msra.mxu0 0.0
        %576 = vmatprep.subr.mxu0 0.0
        %577 = vmatpush1.msra.mxu0 0.0
        %578 = vmatprep.subr.mxu0 0.0
        %579 = vmatpush1.msra.mxu0 0.0
        %580 = vmatprep.subr.mxu0 0.0
        %581 = vmatpush1.msra.mxu0 0.0
        %582 = vmatprep.mubr.f32.mxu0 0.0
        %583 = vmatmul.mubr.f32.gmra.mrb[0].mxu0 %v471
        %v584 = vpop.f32.mrb[0].mxu0
        %v585 = vadd.f32 %v468, %v584
        %v586 = vpop.f32.mrb[0].mxu0
        %587 = vmatprep.mubr.f32.mxu0 0.0
        %588 = vmatmul.mubr.f32.gmra.mrb[0].mxu0 %v474
        %v589 = vpop.f32.mrb[0].mxu0
        %v590 = vadd.f32 %v468, %v589
        %v591 = vpop.f32.mrb[0].mxu0
        %592 = vmatprep.mubr.f32.mxu0 0.0
        %593 = vmatmul.mubr.f32.gmra.mrb[0].mxu0 %v477
        %v594 = vpop.f32.mrb[0].mxu0
        %v595 = vadd.f32 %v468, %v594
        %v596 = vpop.f32.mrb[0].mxu0
        %597 = vmatprep.mubr.f32.mxu0 0.0
        %598 = vmatmul.mubr.f32.gmra.mrb[0].mxu0 %v480
        %v599 = vpop.f32.mrb[0].mxu0
        %v600 = vadd.f32 %v468, %v599
        %v601 = vpop.f32.mrb[0].mxu0
        %602 = vmatprep.mubr.f32.mxu0 0.0
        %603 = vmatmul.mubr.f32.gmra.mrb[0].mxu0 %v483
        %v604 = vpop.f32.mrb[0].mxu0
        %v605 = vadd.f32 %v468, %v604
        %v606 = vpop.f32.mrb[0].mxu0
        %607 = vmatprep.mubr.f32.mxu0 0.0
        %608 = vmatmul.mubr.f32.gmra.mrb[0].mxu0 %v486
        %v609 = vpop.f32.mrb[0].mxu0
        %v610 = vadd.f32 %v468, %v609
        %v611 = vpop.f32.mrb[0].mxu0
        %612 = vmatprep.mubr.f32.mxu0 0.0
        %613 = vmatmul.mubr.f32.gmra.mrb[0].mxu0 %v489
        %v614 = vpop.f32.mrb[0].mxu0
        %v615 = vadd.f32 %v468, %v614
        %v616 = vpop.f32.mrb[0].mxu0
        %617 = vmatprep.mubr.f32.mxu0 0.0
        %618 = vmatmul.mubr.f32.gmra.mrb[0].mxu0 %v492
        %v619 = vpop.f32.mrb[0].mxu0
        %v620 = vadd.f32 %v468, %v619
        %v621 = vpop.f32.mrb[0].mxu0
        %622 = vmatprep.mubr.f32.mxu0 0.0
        %623 = vmatmul.mubr.f32.gmra.mrb[0].mxu0 %v495
        %v624 = vpop.f32.mrb[0].mxu0
        %v625 = vadd.f32 %v468, %v624
        %v626 = vpop.f32.mrb[0].mxu0
        %627 = vmatprep.mubr.f32.mxu0 0.0
        %628 = vmatmul.mubr.f32.gmra.mrb[0].mxu0 %v498
        %v629 = vpop.f32.mrb[0].mxu0
        %v630 = vadd.f32 %v468, %v629
        %v631 = vpop.f32.mrb[0].mxu0
        %632 = vmatprep.mubr.f32.mxu0 0.0
        %633 = vmatmul.mubr.f32.gmra.mrb[0].mxu0 %v501
        %v634 = vpop.f32.mrb[0].mxu0
        %v635 = vadd.f32 %v468, %v634
        %v636 = vpop.f32.mrb[0].mxu0
        %637 = vmatprep.mubr.f32.mxu0 0.0
        %638 = vmatmul.mubr.f32.gmra.mrb[0].mxu0 %v504
        %v639 = vpop.f32.mrb[0].mxu0
        %v640 = vadd.f32 %v468, %v639
        %v641 = vpop.f32.mrb[0].mxu0
        %642 = vmatprep.mubr.f32.mxu0 0.0
        %643 = vmatmul.mubr.f32.gmra.mrb[0].mxu0 %v507
        %v644 = vpop.f32.mrb[0].mxu0
        %v645 = vadd.f32 %v468, %v644
        %v646 = vpop.f32.mrb[0].mxu0
        %647 = vmatprep.mubr.f32.mxu0 0.0
        %648 = vmatmul.mubr.f32.gmra.mrb[0].mxu0 %v510
        %v649 = vpop.f32.mrb[0].mxu0
        %v650 = vadd.f32 %v468, %v649
        %v651 = vpop.f32.mrb[0].mxu0
        %652 = vmatprep.mubr.f32.mxu0 0.0
        %653 = vmatmul.mubr.f32.gmra.mrb[0].mxu0 %v513
        %v654 = vpop.f32.mrb[0].mxu0
        %v655 = vadd.f32 %v468, %v654
        %v656 = vpop.f32.mrb[0].mxu0
        %657 = vmatprep.mubr.f32.mxu0 0.0
        %658 = vmatmul.mubr.f32.gmra.mrb[0].mxu0 %v516
        %v659 = vpop.f32.mrb[0].mxu0
        %v660 = vadd.f32 %v468, %v659
        %v661 = vpop.f32.mrb[0].mxu0
        %662 = vdwg.mxu0
        %v663 = vmax.f32 %v585, 0.0
        %v664 = vmax.f32 %v590, 0.0
        %v665 = vmax.f32 %v595, 0.0
        %v666 = vmax.f32 %v600, 0.0
        %v667 = vmax.f32 %v605, 0.0
        %v668 = vmax.f32 %v610, 0.0
        %v669 = vmax.f32 %v615, 0.0
        %v670 = vmax.f32 %v620, 0.0
        %v671 = vmax.f32 %v625, 0.0
        %v672 = vmax.f32 %v630, 0.0
        %v673 = vmax.f32 %v635, 0.0
        %v674 = vmax.f32 %v640, 0.0
        %v675 = vmax.f32 %v645, 0.0
        %v676 = vmax.f32 %v650, 0.0
        %v677 = vmax.f32 %v655, 0.0
        %v678 = vmax.f32 %v660, 0.0
        %v679 = vld [vmem:[%s3] sm:$0xff]
        %v680 = vld [vmem:[%s3 + $0x8] sm:$0xff]
        %v681 = vld [vmem:[%s3 + $0x10] sm:$0xff]
        %v682 = vld [vmem:[%s3 + $0x18] sm:$0xff]
        %v683 = vlaneseq
        %v684 = vshrl.u32 %v683, 7
        %v685 = vsub.s32 0, %v684
        %v686 = vrot.slane %v228, %v685
        %v688 = vsel %vm469, %v663, 0
        %v691 = vsel %vm469, %v664, 0
        %v694 = vsel %vm469, %v665, 0
        %v697 = vsel %vm469, %v666, 0
        %v700 = vsel %vm469, %v667, 0
        %v703 = vsel %vm469, %v668, 0
        %v706 = vsel %vm469, %v669, 0
        %v709 = vsel %vm469, %v670, 0
        %v712 = vsel %vm469, %v671, 0
        %v715 = vsel %vm469, %v672, 0
        %v718 = vsel %vm469, %v673, 0
        %v721 = vsel %vm469, %v674, 0
        %v724 = vsel %vm469, %v675, 0
        %v727 = vsel %vm469, %v676, 0
        %v730 = vsel %vm469, %v677, 0
        %v733 = vsel %vm469, %v678, 0
        %735 = vmatprep.subr.mxu0 0.0
        %736 = vmatpush1.msra.mxu0 %v679
        %737 = vmatprep.subr.mxu0 0.0
        %738 = vmatpush1.msra.mxu0 %v680
        %739 = vmatprep.subr.mxu0 0.0
        %740 = vmatpush1.msra.mxu0 %v681
        %741 = vmatprep.subr.mxu0 0.0
        %742 = vmatpush1.msra.mxu0 %v682
        %743 = vmatprep.subr.mxu0 0.0
        %744 = vmatpush1.msra.mxu0 0.0
        %745 = vmatprep.subr.mxu0 0.0
        %746 = vmatpush1.msra.mxu0 0.0
        %747 = vmatprep.subr.mxu0 0.0
        %748 = vmatpush1.msra.mxu0 0.0
        %749 = vmatprep.subr.mxu0 0.0
        %750 = vmatpush1.msra.mxu0 0.0
        %751 = vmatprep.subr.mxu0 0.0
        %752 = vmatpush1.msra.mxu0 0.0
        %753 = vmatprep.subr.mxu0 0.0
        %754 = vmatpush1.msra.mxu0 0.0
        %755 = vmatprep.subr.mxu0 0.0
        %756 = vmatpush1.msra.mxu0 0.0
        %757 = vmatprep.subr.mxu0 0.0
        %758 = vmatpush1.msra.mxu0 0.0
        %759 = vmatprep.subr.mxu0 0.0
        %760 = vmatpush1.msra.mxu0 0.0
        %761 = vmatprep.subr.mxu0 0.0
        %762 = vmatpush1.msra.mxu0 0.0
        %763 = vmatprep.subr.mxu0 0.0
        %764 = vmatpush1.msra.mxu0 0.0
        %765 = vmatprep.subr.mxu0 0.0
        %766 = vmatpush1.msra.mxu0 0.0
        %767 = vmatprep.subr.mxu0 0.0
        %768 = vmatpush1.msra.mxu0 0.0
        %769 = vmatprep.subr.mxu0 0.0
        %770 = vmatpush1.msra.mxu0 0.0
        %771 = vmatprep.subr.mxu0 0.0
        %772 = vmatpush1.msra.mxu0 0.0
        %773 = vmatprep.subr.mxu0 0.0
        %774 = vmatpush1.msra.mxu0 0.0
        %775 = vmatprep.subr.mxu0 0.0
        %776 = vmatpush1.msra.mxu0 0.0
        %777 = vmatprep.subr.mxu0 0.0
        %778 = vmatpush1.msra.mxu0 0.0
        %779 = vmatprep.subr.mxu0 0.0
        %780 = vmatpush1.msra.mxu0 0.0
        %781 = vmatprep.subr.mxu0 0.0
        %782 = vmatpush1.msra.mxu0 0.0
        %783 = vmatprep.subr.mxu0 0.0
        %784 = vmatpush1.msra.mxu0 0.0
        %785 = vmatprep.subr.mxu0 0.0
        %786 = vmatpush1.msra.mxu0 0.0
        %787 = vmatprep.subr.mxu0 0.0
        %788 = vmatpush1.msra.mxu0 0.0
        %789 = vmatprep.subr.mxu0 0.0
        %790 = vmatpush1.msra.mxu0 0.0
        %791 = vmatprep.subr.mxu0 0.0
        %792 = vmatpush1.msra.mxu0 0.0
        %793 = vmatprep.subr.mxu0 0.0
        %794 = vmatpush1.msra.mxu0 0.0
        %795 = vmatprep.subr.mxu0 0.0
        %796 = vmatpush1.msra.mxu0 0.0
        %797 = vmatprep.subr.mxu0 0.0
        %798 = vmatpush1.msra.mxu0 0.0
        %799 = vmatprep.mubr.f32.mxu0 0.0
        %800 = vmatmul.mubr.f32.gmra.mrb[0].mxu0 %v688
        %v801 = vpop.f32.mrb[0].mxu0
        %v802 = vadd.f32 %v686, %v801
        %v803 = vpop.f32.mrb[0].mxu0
        %804 = vmatprep.mubr.f32.mxu0 0.0
        %805 = vmatmul.mubr.f32.gmra.mrb[0].mxu0 %v691
        %v806 = vpop.f32.mrb[0].mxu0
        %v807 = vadd.f32 %v686, %v806
        %v808 = vpop.f32.mrb[0].mxu0
        %809 = vmatprep.mubr.f32.mxu0 0.0
        %810 = vmatmul.mubr.f32.gmra.mrb[0].mxu0 %v694
        %v811 = vpop.f32.mrb[0].mxu0
        %v812 = vadd.f32 %v686, %v811
        %v813 = vpop.f32.mrb[0].mxu0
        %814 = vmatprep.mubr.f32.mxu0 0.0
        %815 = vmatmul.mubr.f32.gmra.mrb[0].mxu0 %v697
        %v816 = vpop.f32.mrb[0].mxu0
        %v817 = vadd.f32 %v686, %v816
        %v818 = vpop.f32.mrb[0].mxu0
        %819 = vmatprep.mubr.f32.mxu0 0.0
        %820 = vmatmul.mubr.f32.gmra.mrb[0].mxu0 %v700
        %v821 = vpop.f32.mrb[0].mxu0
        %v822 = vadd.f32 %v686, %v821
        %v823 = vpop.f32.mrb[0].mxu0
        %824 = vmatprep.mubr.f32.mxu0 0.0
        %825 = vmatmul.mubr.f32.gmra.mrb[0].mxu0 %v703
        %v826 = vpop.f32.mrb[0].mxu0
        %v827 = vadd.f32 %v686, %v826
        %v828 = vpop.f32.mrb[0].mxu0
        %829 = vmatprep.mubr.f32.mxu0 0.0
        %830 = vmatmul.mubr.f32.gmra.mrb[0].mxu0 %v706
        %v831 = vpop.f32.mrb[0].mxu0
        %v832 = vadd.f32 %v686, %v831
        %v833 = vpop.f32.mrb[0].mxu0
        %834 = vmatprep.mubr.f32.mxu0 0.0
        %835 = vmatmul.mubr.f32.gmra.mrb[0].mxu0 %v709
        %v836 = vpop.f32.mrb[0].mxu0
        %v837 = vadd.f32 %v686, %v836
        %v838 = vpop.f32.mrb[0].mxu0
        %839 = vmatprep.mubr.f32.mxu0 0.0
        %840 = vmatmul.mubr.f32.gmra.mrb[0].mxu0 %v712
        %v841 = vpop.f32.mrb[0].mxu0
        %v842 = vadd.f32 %v686, %v841
        %v843 = vpop.f32.mrb[0].mxu0
        %844 = vmatprep.mubr.f32.mxu0 0.0
        %845 = vmatmul.mubr.f32.gmra.mrb[0].mxu0 %v715
        %v846 = vpop.f32.mrb[0].mxu0
        %v847 = vadd.f32 %v686, %v846
        %v848 = vpop.f32.mrb[0].mxu0
        %849 = vmatprep.mubr.f32.mxu0 0.0
        %850 = vmatmul.mubr.f32.gmra.mrb[0].mxu0 %v718
        %v851 = vpop.f32.mrb[0].mxu0
        %v852 = vadd.f32 %v686, %v851
        %v853 = vpop.f32.mrb[0].mxu0
        %854 = vmatprep.mubr.f32.mxu0 0.0
        %855 = vmatmul.mubr.f32.gmra.mrb[0].mxu0 %v721
        %v856 = vpop.f32.mrb[0].mxu0
        %v857 = vadd.f32 %v686, %v856
        %v858 = vpop.f32.mrb[0].mxu0
        %859 = vmatprep.mubr.f32.mxu0 0.0
        %860 = vmatmul.mubr.f32.gmra.mrb[0].mxu0 %v724
        %v861 = vpop.f32.mrb[0].mxu0
        %v862 = vadd.f32 %v686, %v861
        %v863 = vpop.f32.mrb[0].mxu0
        %864 = vmatprep.mubr.f32.mxu0 0.0
        %865 = vmatmul.mubr.f32.gmra.mrb[0].mxu0 %v727
        %v866 = vpop.f32.mrb[0].mxu0
        %v867 = vadd.f32 %v686, %v866
        %v868 = vpop.f32.mrb[0].mxu0
        %869 = vmatprep.mubr.f32.mxu0 0.0
        %870 = vmatmul.mubr.f32.gmra.mrb[0].mxu0 %v730
        %v871 = vpop.f32.mrb[0].mxu0
        %v872 = vadd.f32 %v686, %v871
        %v873 = vpop.f32.mrb[0].mxu0
        %874 = vmatprep.mubr.f32.mxu0 0.0
        %875 = vmatmul.mubr.f32.gmra.mrb[0].mxu0 %v733
        %v876 = vpop.f32.mrb[0].mxu0
        %v877 = vadd.f32 %v686, %v876
        %v878 = vpop.f32.mrb[0].mxu0
        %879 = vdwg.mxu0
        %v880 = vtanh.pop %v802
        %v881 = vtanh.pop %v807
        %v882 = vtanh.pop %v812
        %v883 = vtanh.pop %v817
        %v884 = vtanh.pop %v822
        %v885 = vtanh.pop %v827
        %v886 = vtanh.pop %v832
        %v887 = vtanh.pop %v837
        %v888 = vtanh.pop %v842
        %v889 = vtanh.pop %v847
        %v890 = vtanh.pop %v852
        %v891 = vtanh.pop %v857
        %v892 = vtanh.pop %v862
        %v893 = vtanh.pop %v867
        %v894 = vtanh.pop %v872
        %v895 = vtanh.pop %v877
        %v896 = vmax.f32 %v802, -20.0
        %v897 = vmax.f32 %v807, -20.0
        %v898 = vmax.f32 %v812, -20.0
        %v899 = vmax.f32 %v817, -20.0
        %v900 = vmax.f32 %v822, -20.0
        %v901 = vmax.f32 %v827, -20.0
        %v902 = vmax.f32 %v832, -20.0
        %v903 = vmax.f32 %v837, -20.0
        %v904 = vmax.f32 %v842, -20.0
        %v905 = vmax.f32 %v847, -20.0
        %v906 = vmax.f32 %v852, -20.0
        %v907 = vmax.f32 %v857, -20.0
        %v908 = vmax.f32 %v862, -20.0
        %v909 = vmax.f32 %v867, -20.0
        %v910 = vmax.f32 %v872, -20.0
        %v911 = vmax.f32 %v877, -20.0
        %v912 = vmin.f32 %v896, 2.0
        %v913 = vmin.f32 %v897, 2.0
        %v914 = vmin.f32 %v898, 2.0
        %v915 = vmin.f32 %v899, 2.0
        %v916 = vmin.f32 %v900, 2.0
        %v917 = vmin.f32 %v901, 2.0
        %v918 = vmin.f32 %v902, 2.0
        %v919 = vmin.f32 %v903, 2.0
        %v920 = vmin.f32 %v904, 2.0
        %v921 = vmin.f32 %v905, 2.0
        %v922 = vmin.f32 %v906, 2.0
        %v923 = vmin.f32 %v907, 2.0
        %v924 = vmin.f32 %v908, 2.0
        %v925 = vmin.f32 %v909, 2.0
        %v926 = vmin.f32 %v910, 2.0
        %v927 = vmin.f32 %v911, 2.0
        %944 = vrot.lane.b32.xlu0 %v880, 8
        %v945 = vpop.permute.xlu0 %944
        %946 = vrot.lane.b32.xlu0 %v881, 8
        %v947 = vpop.permute.xlu0 %946
        %948 = vrot.lane.b32.xlu0 %v882, 8
        %v949 = vpop.permute.xlu0 %948
        %950 = vrot.lane.b32.xlu0 %v883, 8
        %v951 = vpop.permute.xlu0 %950
        %952 = vrot.lane.b32.xlu0 %v884, 8
        %v953 = vpop.permute.xlu0 %952
        %954 = vrot.lane.b32.xlu0 %v885, 8
        %v955 = vpop.permute.xlu0 %954
        %956 = vrot.lane.b32.xlu0 %v886, 8
        %v957 = vpop.permute.xlu0 %956
        %958 = vrot.lane.b32.xlu0 %v887, 8
        %v959 = vpop.permute.xlu0 %958
        %960 = vrot.lane.b32.xlu0 %v888, 8
        %v961 = vpop.permute.xlu0 %960
        %962 = vrot.lane.b32.xlu0 %v889, 8
        %v963 = vpop.permute.xlu0 %962
        %964 = vrot.lane.b32.xlu0 %v890, 8
        %v965 = vpop.permute.xlu0 %964
        %966 = vrot.lane.b32.xlu0 %v891, 8
        %v967 = vpop.permute.xlu0 %966
        %968 = vrot.lane.b32.xlu0 %v892, 8
        %v969 = vpop.permute.xlu0 %968
        %970 = vrot.lane.b32.xlu0 %v893, 8
        %v971 = vpop.permute.xlu0 %970
        %972 = vrot.lane.b32.xlu0 %v894, 8
        %v973 = vpop.permute.xlu0 %972
        %974 = vrot.lane.b32.xlu0 %v895, 8
        %v975 = vpop.permute.xlu0 %974
        %1008 = vrot.lane.b32.xlu0 %v912, 8
        %v1009 = vpop.permute.xlu0 %1008
        %1010 = vrot.lane.b32.xlu0 %v913, 8
        %v1011 = vpop.permute.xlu0 %1010
        %1012 = vrot.lane.b32.xlu0 %v914, 8
        %v1013 = vpop.permute.xlu0 %1012
        %1014 = vrot.lane.b32.xlu0 %v915, 8
        %v1015 = vpop.permute.xlu0 %1014
        %1016 = vrot.lane.b32.xlu0 %v916, 8
        %v1017 = vpop.permute.xlu0 %1016
        %1018 = vrot.lane.b32.xlu0 %v917, 8
        %v1019 = vpop.permute.xlu0 %1018
        %1020 = vrot.lane.b32.xlu0 %v918, 8
        %v1021 = vpop.permute.xlu0 %1020
        %1022 = vrot.lane.b32.xlu0 %v919, 8
        %v1023 = vpop.permute.xlu0 %1022
        %1024 = vrot.lane.b32.xlu0 %v920, 8
        %v1025 = vpop.permute.xlu0 %1024
        %1026 = vrot.lane.b32.xlu0 %v921, 8
        %v1027 = vpop.permute.xlu0 %1026
        %1028 = vrot.lane.b32.xlu0 %v922, 8
        %v1029 = vpop.permute.xlu0 %1028
        %1030 = vrot.lane.b32.xlu0 %v923, 8
        %v1031 = vpop.permute.xlu0 %1030
        %1032 = vrot.lane.b32.xlu0 %v924, 8
        %v1033 = vpop.permute.xlu0 %1032
        %1034 = vrot.lane.b32.xlu0 %v925, 8
        %v1035 = vpop.permute.xlu0 %1034
        %1036 = vrot.lane.b32.xlu0 %v926, 8
        %v1037 = vpop.permute.xlu0 %1036
        %1038 = vrot.lane.b32.xlu0 %v927, 8
        %v1039 = vpop.permute.xlu0 %1038
        %vm1056 = vcmask 64512
        %v1057 = vsel %vm1056, %v802, %v945
        %v1058 = vsel %vm1056, %v807, %v947
        %v1059 = vsel %vm1056, %v812, %v949
        %v1060 = vsel %vm1056, %v817, %v951
        %v1061 = vsel %vm1056, %v822, %v953
        %v1062 = vsel %vm1056, %v827, %v955
        %v1063 = vsel %vm1056, %v832, %v957
        %v1064 = vsel %vm1056, %v837, %v959
        %v1065 = vsel %vm1056, %v842, %v961
        %v1066 = vsel %vm1056, %v847, %v963
        %v1067 = vsel %vm1056, %v852, %v965
        %v1068 = vsel %vm1056, %v857, %v967
        %v1069 = vsel %vm1056, %v862, %v969
        %v1070 = vsel %vm1056, %v867, %v971
        %v1071 = vsel %vm1056, %v872, %v973
        %v1072 = vsel %vm1056, %v877, %v975
        %v1073 = vsel %vm251, %v1057, %v1009
        %v1074 = vsel %vm251, %v1058, %v1011
        %v1075 = vsel %vm251, %v1059, %v1013
        %v1076 = vsel %vm251, %v1060, %v1015
        %v1077 = vsel %vm251, %v1061, %v1017
        %v1078 = vsel %vm251, %v1062, %v1019
        %v1079 = vsel %vm251, %v1063, %v1021
        %v1080 = vsel %vm251, %v1064, %v1023
        %v1081 = vsel %vm251, %v1065, %v1025
        %v1082 = vsel %vm251, %v1066, %v1027
        %v1083 = vsel %vm251, %v1067, %v1029
        %v1084 = vsel %vm251, %v1068, %v1031
        %v1085 = vsel %vm251, %v1069, %v1033
        %v1086 = vsel %vm251, %v1070, %v1035
        %v1087 = vsel %vm251, %v1071, %v1037
        %v1088 = vsel %vm251, %v1072, %v1039
        %vm1089 = vcmask 195584
        %v1090 = vsel %vm1089, %v1073, 0.0
        %v1091 = vsel %vm1089, %v1074, 0.0
        %v1092 = vsel %vm1089, %v1075, 0.0
        %v1093 = vsel %vm1089, %v1076, 0.0
        %v1094 = vsel %vm1089, %v1077, 0.0
        %v1095 = vsel %vm1089, %v1078, 0.0
        %v1096 = vsel %vm1089, %v1079, 0.0
        %v1097 = vsel %vm1089, %v1080, 0.0
        %v1098 = vsel %vm1089, %v1081, 0.0
        %v1099 = vsel %vm1089, %v1082, 0.0
        %v1100 = vsel %vm1089, %v1083, 0.0
        %v1101 = vsel %vm1089, %v1084, 0.0
        %v1102 = vsel %vm1089, %v1085, 0.0
        %v1103 = vsel %vm1089, %v1086, 0.0
        %v1104 = vsel %vm1089, %v1087, 0.0
        %v1105 = vsel %vm1089, %v1088, 0.0
        %1106 = vst [vmem:[%s218] sm:$0xff] %v1090
        %1107 = vst [vmem:[%s218 + $0x8] sm:$0xff] %v1091
        %1108 = vst [vmem:[%s218 + $0x10] sm:$0xff] %v1092
        %1109 = vst [vmem:[%s218 + $0x18] sm:$0xff] %v1093
        %1110 = vst [vmem:[%s218 + $0x20] sm:$0xff] %v1094
        %1111 = vst [vmem:[%s218 + $0x28] sm:$0xff] %v1095
        %1112 = vst [vmem:[%s218 + $0x30] sm:$0xff] %v1096
        %1113 = vst [vmem:[%s218 + $0x38] sm:$0xff] %v1097
        %1114 = vst [vmem:[%s218 + $0x40] sm:$0xff] %v1098
        %1115 = vst [vmem:[%s218 + $0x48] sm:$0xff] %v1099
        %1116 = vst [vmem:[%s218 + $0x50] sm:$0xff] %v1100
        %1117 = vst [vmem:[%s218 + $0x58] sm:$0xff] %v1101
        %1118 = vst [vmem:[%s218 + $0x60] sm:$0xff] %v1102
        %1119 = vst [vmem:[%s218 + $0x68] sm:$0xff] %v1103
        %1120 = vst [vmem:[%s218 + $0x70] sm:$0xff] %v1104
        %1121 = vst [vmem:[%s218 + $0x78] sm:$0xff] %v1105
        %s1122 = sand.u32 %s137, 1
        %s1123 = scalar_lea.sflag [#allocation3], %s1122
        %s1124 = sand.u32 %s137, 1
        %s1125 = smul.addr %s1124, 128
        %s1126 = scalar_lea.vmem [#allocation2], %s1125
        // Predicated region
        $region41: #{tpu_custom_call.1} parent=39 // pred_check
          %p1127 = pneg %p147
        $region42: #{tpu_custom_call.1} parent=39 // pred_check_branch
          %1129 = sbr.rel (%p1127) target = $region44
        $region43: #{tpu_custom_call.1} parent=39 // pred_region
          %s1130 = smul.u32 16, %s19
          %s1132 = ssub.s32 2048, 2048
          %1133 = vsyncadd %s1123, %s1132
          %s1134 = smul.addr %s1130, 128
          %s1135 = scalar_lea.hbm %s5, %s1134
          %s1136 = sshll.u32 %s1126, 4
          %s1137 = int_to_ptr.vmem [resolvable:$true] %s1136
          %1142 = dma.vmem_to_hbm [thread:$0]  %s1137, 2048, %s1135, %s1123, 128, 128, 8
        $region44: #{tpu_custom_call.1} parent=39 // pred_fallthru
          _
      $region40: #{tpu_custom_call.1} parent=5 // pred_fallthru
        _
      %p1143 = scmp.le.s32.totalorder 2, %s14
      // Predicated region
      $region45: #{tpu_custom_call.1} parent=5 // pred_check
        %p1144 = pneg %p1143
      $region46: #{tpu_custom_call.1} parent=5 // pred_check_branch
        %1146 = sbr.rel (%p1144) target = $region48
      $region47: #{tpu_custom_call.1} parent=5 // pred_region
        %s1147 = ssub.s32 %s14, 2
        // Predicated region
        $region49: #{tpu_custom_call.1} parent=47 // pred_check
          %p1148 = pneg %p153
        $region50: #{tpu_custom_call.1} parent=47 // pred_check_branch
          %1150 = sbr.rel (%p1148) target = $region52
        $region51: #{tpu_custom_call.1} parent=47 // pred_region
          %s1151 = sand.u32 %s138, 1
          %s1152 = scalar_lea.sflag [#allocation3], %s1151
          %s1153 = sand.u32 %s138, 1
          %s1154 = smul.addr %s1153, 128
          %s1155 = scalar_lea.vmem [#allocation2], %s1154
          %1156 = dma.done %s1152, 2048
        $region52: #{tpu_custom_call.1} parent=47 // pred_fallthru
          _
      $region48: #{tpu_custom_call.1} parent=5 // pred_fallthru
        _
    $region6: #{tpu_custom_call.1} parent=1 // loop_footer
      %s18 = sadd.s32 1, %s14
    $region7: #{tpu_custom_call.1} parent=1 // loop_footer_branch
      %13 = sbr.rel target = $region3
    $region8: #{tpu_custom_call.1} parent=1 // loop_exit
      _
    %1157 = vsyncpa [#allocation3], 1
    %s1158 = scalar_lea.sflag [#allocation3], 1
    %1159 = vsyncpa %s1158, 1

</llo_original>
